<compile_context>
chip_gen: v7x
topology: tpu7x:2x2x1
jax: 0.10.0
libtpu: 0.0.40
codegen_flags: <defaults>
</compile_context>

<pallas_src>
import functools

import jax
import jax.numpy as jnp
from jax.experimental import pallas as pl
from jax.experimental.pallas import tpu as pltpu


def _round_up(v: int, m: int) -> int:
    return ((v + m - 1) // m) * m


def _fused_mlp_kernel(*refs, num_layers: int, pdims):
    """o = L_{n-1}(relu(...relu(L_0(x))...)), all layers fused in one body.

    refs = (x, w0, b0, ..., w_{n-1}, b_{n-1}, o, act_scratch). Every operand
    block is already resident in VMEM; hidden activations round-trip through
    the act_scratch VMEM buffer (bounds live ranges), and the only HBM store
    is the final lane-dense output tile.
    """
    x_ref = refs[0]
    o_ref = refs[1 + 2 * num_layers]
    act_ref = refs[2 + 2 * num_layers]

    x = x_ref[...]                                      # (tm, pdims[0]) compute dtype
    for l in range(num_layers):
        w = refs[1 + 2 * l][...]                        # (pdims[l], pdims[l+1])
        b = refs[2 + 2 * l][...]                        # (1, pdims[l+1]) f32 row
        y = jnp.dot(x, w, preferred_element_type=jnp.float32) + b
        if l < num_layers - 1:
            y = jnp.maximum(y, 0.0)                     # ReLU in f32
            n = pdims[l + 1]
            act_ref[:, :n] = y.astype(act_ref.dtype)    # stage through VMEM scratch
            x = act_ref[:, :n]
        else:
            o_ref[...] = y.astype(o_ref.dtype)


def prepare_mlp_params(params, *, compute_dtype=jnp.float32):
    """One-time parameter prep, hoisted out of the per-call forward path.

    Pads every feature dim to a multiple of 128 (lane-dense), reshapes biases
    to (1, n) rows, and casts weights to `compute_dtype` (bf16 for the v6e/v7x
    MXU). Biases stay f32: bias add and ReLU are performed in f32.
    Padded columns/rows are zero so real outputs are exact.
    """
    padded = []
    for w, b in params:
        n_in, n_out = w.shape
        pi, po = _round_up(n_in, 128), _round_up(n_out, 128)
        w_p = jnp.pad(w, ((0, pi - n_in), (0, po - n_out))).astype(compute_dtype)
        b_p = jnp.pad(b.reshape(1, -1), ((0, 0), (0, po - n_out))).astype(jnp.float32)
        padded.append((w_p, b_p))
    return padded


def mlp_forward_fused(padded_params, x, *, out_dim: int, block_m: int = 256):
    """Fused forward pass mirroring the PyTorch MLP.forward loop.

    `padded_params` must come from prepare_mlp_params (padding / dtype cast is
    done once, outside this function). Only the activation x is padded here.
    """
    num_layers = len(padded_params)
    compute_dtype = padded_params[0][0].dtype
    pdims = [padded_params[0][0].shape[0]] + [w.shape[1] for w, _ in padded_params]

    batch, in_dim = x.shape
    out_dtype = x.dtype
    assert pdims[0] == _round_up(in_dim, 128), "params / input dim mismatch"

    # Row tile: multiple of the sublane packing (16 for bf16, 8 for f32),
    # capped at block_m (256 fills the v6e/v7x 256-wide MXU). Aim for >= 2
    # grid steps when the batch allows so v7x's two TensorCores both get rows.
    sublane = 16 if compute_dtype == jnp.bfloat16 else 8
    if batch > sublane:
        tm = min(_round_up((batch + 1) // 2, sublane), block_m)
    else:
        tm = _round_up(batch, sublane)
    m_pad = _round_up(batch, tm)
    grid_m = m_pad // tm

    # Per-call work: pad + cast the activation only (weights pre-padded).
    x_p = jnp.pad(x, ((0, m_pad - batch), (0, pdims[0] - in_dim))).astype(compute_dtype)

    flat = []
    for w_p, b_p in padded_params:
        flat += [w_p, b_p]

    # Weights/biases: constant index_map over the M grid axis -> VMEM-resident;
    # single-buffer them (a second pipeline buffer would be pure waste).
    in_specs = [pl.BlockSpec((tm, pdims[0]), lambda i: (i, 0))]
    for l in range(num_layers):
        in_specs.append(pl.BlockSpec((pdims[l], pdims[l + 1]), lambda i: (0, 0),
                                     pipeline_mode=pl.Buffered(1)))
        in_specs.append(pl.BlockSpec((1, pdims[l + 1]), lambda i: (0, 0),
                                     pipeline_mode=pl.Buffered(1)))
    out_specs = pl.BlockSpec((tm, pdims[-1]), lambda i: (i, 0))

    # Hidden-activation staging buffer (bounds live ranges for wide hiddens).
    max_hidden = max(pdims[1:-1], default=128)
    scratch_shapes = [pltpu.VMEM((tm, max_hidden), compute_dtype)]

    # VMEM budget: resident weights + biases (single-buffered) + double-buffered
    # x/out tiles + the activation scratch. Guard the ~48 MiB-per-TC weight
    # budget (v7x has 64 MiB VMEM/TC) and set the scoped limit explicitly
    # (default is only 16/32 MiB).
    cbytes = jnp.dtype(compute_dtype).itemsize
    obytes = jnp.dtype(out_dtype).itemsize
    resident_bytes = sum(int(a.size) * a.dtype.itemsize for a in flat)
    if resident_bytes > (48 << 20):
        raise ValueError(
            f"resident padded weights ({resident_bytes >> 20} MiB) exceed the "
            "~48 MiB per-TC budget safe for v7x; use bf16 weights or N-tile "
            "the layers (emit_pipeline over N/K chunks).")
    needed = (resident_bytes
              + 2 * tm * pdims[0] * cbytes
              + 2 * tm * pdims[-1] * obytes
              + tm * max_hidden * cbytes)
    vmem_limit = int(min(max(2 * needed + (8 << 20), 16 << 20), 64 << 20))

    flops = 2 * sum(m_pad * pdims[l] * pdims[l + 1] for l in range(num_layers))
    bytes_accessed = (int(x_p.size) * cbytes + resident_bytes
                      + m_pad * pdims[-1] * obytes)

    kernel = functools.partial(_fused_mlp_kernel, num_layers=num_layers,
                               pdims=tuple(pdims))
    out_p = pl.pallas_call(
        kernel,
        out_shape=jax.ShapeDtypeStruct((m_pad, pdims[-1]), out_dtype),
        grid=(grid_m,),
        in_specs=in_specs,
        out_specs=out_specs,
        scratch_shapes=scratch_shapes,
        compiler_params=pltpu.CompilerParams(
            dimension_semantics=("parallel",),          # shard rows across TCs
            vmem_limit_bytes=vmem_limit),
        cost_estimate=pl.CostEstimate(flops=int(flops), transcendentals=0,
                                      bytes_accessed=int(bytes_accessed)),
    )(x_p, *flat)

    # Slice row/column padding back off outside the kernel.
    return out_p[:batch, :out_dim]


def init_mlp_params(key, input_dim, hidden_dim, output_dim, num_layers):
    """Deterministic init matching nn.Linear shapes.

    Layer i maps dims[i] -> dims[i+1]; weight stored as (in, out) = W^T,
    bias as (out,). Uses uniform(-1/sqrt(fan_in), 1/sqrt(fan_in)) like torch.
    """
    h = [hidden_dim] * (num_layers - 1)
    in_dims = [input_dim] + h
    out_dims = h + [output_dim]
    params = []
    for n_in, n_out in zip(in_dims, out_dims):
        key, kw, kb = jax.random.split(key, 3)
        bound = 1.0 / jnp.sqrt(jnp.float32(n_in))
        w = jax.random.uniform(kw, (n_in, n_out), jnp.float32, -bound, bound)
        b = jax.random.uniform(kb, (n_out,), jnp.float32, -bound, bound)
        params.append((w, b))
    return params


def mlp_reference(params, x):
    """Plain-JAX reference for correctness checking."""
    num_layers = len(params)
    for i, (w, b) in enumerate(params):
        y = x @ w + b
        x = jnp.maximum(y, 0.0) if i < num_layers - 1 else y
    return x


if __name__ == "__main__":
    # Small shapes consistent with the module: MLP(input_dim, hidden_dim,
    # output_dim, num_layers) applied to a (batch, input_dim) input.
    batch = 8
    input_dim = 32
    hidden_dim = 64
    output_dim = 16
    num_layers = 3

    key = jax.random.PRNGKey(0)
    key, kx = jax.random.split(key)
    x = jax.random.normal(kx, (batch, input_dim), jnp.float32)
    params = init_mlp_params(key, input_dim, hidden_dim, output_dim, num_layers)
    ref = mlp_reference(params, x)

    fwd = jax.jit(functools.partial(mlp_forward_fused, out_dim=output_dim))

    # f32 path: matches nn.Linear / F.linear semantics.
    prep_f32 = prepare_mlp_params(params)                    # one-time prep
    out = jax.block_until_ready(fwd(prep_f32, x))
    assert out.shape == (batch, output_dim)
    assert jnp.allclose(out, ref, atol=1e-5, rtol=1e-5)

    # bf16 MXU path (v6e/v7x): bf16 weights/activations shipped to the kernel,
    # f32 accumulation + bias + ReLU. Scale-based tolerance (tighter than the
    # previous 1e-1 blanket bound).
    prep_bf16 = prepare_mlp_params(params, compute_dtype=jnp.bfloat16)
    out_bf16 = jax.block_until_ready(fwd(prep_bf16, x))
    assert out_bf16.shape == (batch, output_dim)
    scale = float(jnp.max(jnp.abs(ref)))
    tol = 4e-2 * max(scale, 1.0)
    assert float(jnp.max(jnp.abs(out_bf16 - ref))) < tol

    print("KERNEL_OK")
</pallas_src>

<mosaic_0001>
module attributes {stable_mosaic.version = 11 : i64} {
  func.func @_fused_mlp_kernel(%arg0: i32, %arg1: memref<8x128xf32, #tpu.memory_space<vmem>>, %arg2: memref<128x128xf32, #tpu.memory_space<vmem>>, %arg3: memref<1x128xf32, #tpu.memory_space<vmem>>, %arg4: memref<128x128xf32, #tpu.memory_space<vmem>>, %arg5: memref<1x128xf32, #tpu.memory_space<vmem>>, %arg6: memref<128x128xf32, #tpu.memory_space<vmem>>, %arg7: memref<1x128xf32, #tpu.memory_space<vmem>>, %arg8: memref<8x128xf32, #tpu.memory_space<vmem>>, %arg9: memref<8x128xf32, #tpu.memory_space<vmem>>) attributes {dimension_semantics = [#tpu.dimension_semantics<parallel>], iteration_bounds = array<i64: 1>, scalar_prefetch = 0 : i64, scratch_operands = 1 : i64, tpu.core_type = #tpu.core_type<tc>, window_params = [{transform_indices = @transform_0, window_bounds = array<i64: 8, 128>}, {pipeline_mode = #tpu.pipeline_mode<synchronous>, transform_indices = @transform_1, window_bounds = array<i64: 128, 128>}, {pipeline_mode = #tpu.pipeline_mode<synchronous>, transform_indices = @transform_2, window_bounds = array<i64: 1, 128>}, {pipeline_mode = #tpu.pipeline_mode<synchronous>, transform_indices = @transform_3, window_bounds = array<i64: 128, 128>}, {pipeline_mode = #tpu.pipeline_mode<synchronous>, transform_indices = @transform_4, window_bounds = array<i64: 1, 128>}, {pipeline_mode = #tpu.pipeline_mode<synchronous>, transform_indices = @transform_5, window_bounds = array<i64: 128, 128>}, {pipeline_mode = #tpu.pipeline_mode<synchronous>, transform_indices = @transform_6, window_bounds = array<i64: 1, 128>}, {transform_indices = @transform_7, window_bounds = array<i64: 8, 128>}]} {
    %c0 = arith.constant 0 : index
    %c0_0 = arith.constant 0 : index
    %0 = vector.load %arg1[%c0, %c0_0] : memref<8x128xf32, #tpu.memory_space<vmem>>, vector<8x128xf32>
    %c0_1 = arith.constant 0 : index
    %c0_2 = arith.constant 0 : index
    %1 = vector.load %arg2[%c0_1, %c0_2] : memref<128x128xf32, #tpu.memory_space<vmem>>, vector<128x128xf32>
    %c0_3 = arith.constant 0 : index
    %c0_4 = arith.constant 0 : index
    %2 = vector.load %arg3[%c0_3, %c0_4] : memref<1x128xf32, #tpu.memory_space<vmem>>, vector<1x128xf32>
    %cst = arith.constant dense<0.000000e+00> : vector<8x128xf32>
    %3 = tpu.matmul %0, %1, %cst {dimension_numbers = #tpu.dot_dimension_numbers<[1], [0], [0], [1], [0, 0, 1, 1], [], []>} : vector<8x128xf32>, vector<128x128xf32>, vector<8x128xf32> -> vector<8x128xf32>
    %4 = vector.broadcast %2 : vector<1x128xf32> to vector<8x128xf32>
    %5 = arith.addf %3, %4 : vector<8x128xf32>
    %cst_5 = arith.constant 0.000000e+00 : f32
    %6 = vector.broadcast %cst_5 : f32 to vector<8x128xf32>
    %7 = arith.maximumf %5, %6 : vector<8x128xf32>
    %c0_6 = arith.constant 0 : index
    %c0_7 = arith.constant 0 : index
    %8 = vector.load %arg9[%c0_6, %c0_7] : memref<8x128xf32, #tpu.memory_space<vmem>>, vector<8x128xf32>
    tpu.vector_store %arg9[%c0_6, %c0_7], %7 {strides = array<i32>} : memref<8x128xf32, #tpu.memory_space<vmem>>, vector<8x128xf32>,
    %c0_8 = arith.constant 0 : index
    %c0_9 = arith.constant 0 : index
    %9 = vector.load %arg9[%c0_8, %c0_9] : memref<8x128xf32, #tpu.memory_space<vmem>>, vector<8x128xf32>
    %c0_10 = arith.constant 0 : index
    %c0_11 = arith.constant 0 : index
    %10 = vector.load %arg4[%c0_10, %c0_11] : memref<128x128xf32, #tpu.memory_space<vmem>>, vector<128x128xf32>
    %c0_12 = arith.constant 0 : index
    %c0_13 = arith.constant 0 : index
    %11 = vector.load %arg5[%c0_12, %c0_13] : memref<1x128xf32, #tpu.memory_space<vmem>>, vector<1x128xf32>
    %cst_14 = arith.constant dense<0.000000e+00> : vector<8x128xf32>
    %12 = tpu.matmul %9, %10, %cst_14 {dimension_numbers = #tpu.dot_dimension_numbers<[1], [0], [0], [1], [0, 0, 1, 1], [], []>} : vector<8x128xf32>, vector<128x128xf32>, vector<8x128xf32> -> vector<8x128xf32>
    %13 = vector.broadcast %11 : vector<1x128xf32> to vector<8x128xf32>
    %14 = arith.addf %12, %13 : vector<8x128xf32>
    %cst_15 = arith.constant 0.000000e+00 : f32
    %15 = vector.broadcast %cst_15 : f32 to vector<8x128xf32>
    %16 = arith.maximumf %14, %15 : vector<8x128xf32>
    %c0_16 = arith.constant 0 : index
    %c0_17 = arith.constant 0 : index
    %17 = vector.load %arg9[%c0_16, %c0_17] : memref<8x128xf32, #tpu.memory_space<vmem>>, vector<8x128xf32>
    tpu.vector_store %arg9[%c0_16, %c0_17], %16 {strides = array<i32>} : memref<8x128xf32, #tpu.memory_space<vmem>>, vector<8x128xf32>,
    %c0_18 = arith.constant 0 : index
    %c0_19 = arith.constant 0 : index
    %18 = vector.load %arg9[%c0_18, %c0_19] : memref<8x128xf32, #tpu.memory_space<vmem>>, vector<8x128xf32>
    %c0_20 = arith.constant 0 : index
    %c0_21 = arith.constant 0 : index
    %19 = vector.load %arg6[%c0_20, %c0_21] : memref<128x128xf32, #tpu.memory_space<vmem>>, vector<128x128xf32>
    %c0_22 = arith.constant 0 : index
    %c0_23 = arith.constant 0 : index
    %20 = vector.load %arg7[%c0_22, %c0_23] : memref<1x128xf32, #tpu.memory_space<vmem>>, vector<1x128xf32>
    %cst_24 = arith.constant dense<0.000000e+00> : vector<8x128xf32>
    %21 = tpu.matmul %18, %19, %cst_24 {dimension_numbers = #tpu.dot_dimension_numbers<[1], [0], [0], [1], [0, 0, 1, 1], [], []>} : vector<8x128xf32>, vector<128x128xf32>, vector<8x128xf32> -> vector<8x128xf32>
    %22 = vector.broadcast %20 : vector<1x128xf32> to vector<8x128xf32>
    %23 = arith.addf %21, %22 : vector<8x128xf32>
    %c0_25 = arith.constant 0 : index
    %c0_26 = arith.constant 0 : index
    %24 = vector.load %arg8[%c0_25, %c0_26] : memref<8x128xf32, #tpu.memory_space<vmem>>, vector<8x128xf32>
    tpu.vector_store %arg8[%c0_25, %c0_26], %23 {strides = array<i32>} : memref<8x128xf32, #tpu.memory_space<vmem>>, vector<8x128xf32>,
    return
  }
  func.func @transform_0(%arg0: i32) -> (i32, i32) {
    %c0_i32 = arith.constant 0 : i32
    %c0_i32_0 = arith.constant 0 : i32
    return %arg0, %c0_i32 : i32, i32
  }
  func.func @transform_1(%arg0: i32) -> (i32, i32) {
    %c0_i32 = arith.constant 0 : i32
    %c0_i32_0 = arith.constant 0 : i32
    %c0_i32_1 = arith.constant 0 : i32
    return %c0_i32, %c0_i32_0 : i32, i32
  }
  func.func @transform_2(%arg0: i32) -> (i32, i32) {
    %c0_i32 = arith.constant 0 : i32
    %c0_i32_0 = arith.constant 0 : i32
    %c0_i32_1 = arith.constant 0 : i32
    return %c0_i32, %c0_i32_0 : i32, i32
  }
  func.func @transform_3(%arg0: i32) -> (i32, i32) {
    %c0_i32 = arith.constant 0 : i32
    %c0_i32_0 = arith.constant 0 : i32
    %c0_i32_1 = arith.constant 0 : i32
    return %c0_i32, %c0_i32_0 : i32, i32
  }
  func.func @transform_4(%arg0: i32) -> (i32, i32) {
    %c0_i32 = arith.constant 0 : i32
    %c0_i32_0 = arith.constant 0 : i32
    %c0_i32_1 = arith.constant 0 : i32
    return %c0_i32, %c0_i32_0 : i32, i32
  }
  func.func @transform_5(%arg0: i32) -> (i32, i32) {
    %c0_i32 = arith.constant 0 : i32
    %c0_i32_0 = arith.constant 0 : i32
    %c0_i32_1 = arith.constant 0 : i32
    return %c0_i32, %c0_i32_0 : i32, i32
  }
  func.func @transform_6(%arg0: i32) -> (i32, i32) {
    %c0_i32 = arith.constant 0 : i32
    %c0_i32_0 = arith.constant 0 : i32
    %c0_i32_1 = arith.constant 0 : i32
    return %c0_i32, %c0_i32_0 : i32, i32
  }
  func.func @transform_7(%arg0: i32) -> (i32, i32) {
    %c0_i32 = arith.constant 0 : i32
    %c0_i32_0 = arith.constant 0 : i32
    return %arg0, %c0_i32 : i32, i32
  }
}

</mosaic_0001>

<llo_original>
// kernel: mlp_forward_fused.1
$region0: #{mlp_forward_fused.1}
  #allocation0 [shape = 'u32[]', space=smem, size = 0x4, offset = 0x4, fixed_abs, tag = 'smem constant byte address 0x4 - core index']
  #allocation1 [shape = 'u32[144,128]{1,0:T(1,128)}', space=vmem, size = 0x12000, scoped, tag = 'internal scratch']
  #allocation2 [shape = 'f32[8,128]{1,0:T(8,128)}', space=vmem, size = 0x1000, scoped, tag = 'scratch operand']
  %s0 = inlined_call_operand.vmem [shape: f32[8,128], index: 0, kind: input, shape index: {}]
  %s1 = inlined_call_operand.hbm [shape: f32[128,128], index: 1, kind: input, shape index: {}]
  %s2 = inlined_call_operand.vmem [shape: f32[1,128], index: 2, kind: input, shape index: {}]
  %s3 = inlined_call_operand.hbm [shape: f32[128,128], index: 3, kind: input, shape index: {}]
  %s4 = inlined_call_operand.vmem [shape: f32[1,128], index: 4, kind: input, shape index: {}]
  %s5 = inlined_call_operand.hbm [shape: f32[128,128], index: 5, kind: input, shape index: {}]
  %s6 = inlined_call_operand.vmem [shape: f32[1,128], index: 6, kind: input, shape index: {}]
  %s7 = inlined_call_operand.hbm [shape: f32[8,128], index: 7, kind: output, shape index: {}]
  %s8 = sld [smem:[#allocation0]]
  $region50: #{mlp_forward_fused.1} parent=0
    _
  %s10 = ssub.s32 1, %s8
  %s11 = scalar_select 0, %s10, %s8
  $region1: #{mlp_forward_fused.1} parent=0
    #allocation3 [shape = 'u8[65536]{0}', space=vmem, size = 0x10000, scoped, tag = 'input window, operand 1, single buffered']
    #allocation4 [shape = 's32[1]{0}', space=sflag, size = 0x4, scoped, tag = 'scoped memory for mlp_forward_fused.1']
    #allocation5 [shape = 's32[1]{0}', space=sflag, size = 0x4, scoped, tag = 'scoped memory for mlp_forward_fused.1']
    #allocation6 [shape = 'u8[65536]{0}', space=vmem, size = 0x10000, scoped, tag = 'input window, operand 3, single buffered']
    #allocation7 [shape = 's32[1]{0}', space=sflag, size = 0x4, scoped, tag = 'scoped memory for mlp_forward_fused.1']
    #allocation8 [shape = 'u8[65536]{0}', space=vmem, size = 0x10000, scoped, tag = 'input window, operand 5, single buffered']
    #allocation9 [shape = 'u8[4096]{0}', space=vmem, size = 0x1000, scoped, tag = 'output window, operand 0, single buffered']
    %12 = vsyncpa [#allocation4], 0
    %13 = vsyncpa [#allocation7], 0
    %14 = vsyncpa [#allocation5], 0
    // Predicated region
    $region2: #{mlp_forward_fused.1} parent=1 // pred_check
      _
    $region3: #{mlp_forward_fused.1} parent=1 // pred_check_branch
      %16 = sbr.rel (0) target = $region5
    $region4: #{mlp_forward_fused.1} parent=1 // pred_region
      _
    $region5: #{mlp_forward_fused.1} parent=1 // pred_fallthru
      _
    // Predicated region
    $region6: #{mlp_forward_fused.1} parent=1 // pred_check
      _
    $region7: #{mlp_forward_fused.1} parent=1 // pred_check_branch
      %18 = sbr.rel (0) target = $region9
    $region8: #{mlp_forward_fused.1} parent=1 // pred_region
      %s20 = ssub.s32 2048, 2048
      %21 = vsyncadd [#allocation4], %s20
      %s22 = sshll.u32 [#allocation3], 4
      %s23 = int_to_ptr.vmem [resolvable:$true] %s22
      %28 = dma.hbm_to_vmem [thread:$0]  %s1, 2048, %s23, [#allocation4], 128, 128, 8
    $region9: #{mlp_forward_fused.1} parent=1 // pred_fallthru
      _
    // Predicated region
    $region10: #{mlp_forward_fused.1} parent=1 // pred_check
      _
    $region11: #{mlp_forward_fused.1} parent=1 // pred_check_branch
      %30 = sbr.rel (0) target = $region13
    $region12: #{mlp_forward_fused.1} parent=1 // pred_region
      _
    $region13: #{mlp_forward_fused.1} parent=1 // pred_fallthru
      _
    // Predicated region
    $region14: #{mlp_forward_fused.1} parent=1 // pred_check
      _
    $region15: #{mlp_forward_fused.1} parent=1 // pred_check_branch
      %32 = sbr.rel (0) target = $region17
    $region16: #{mlp_forward_fused.1} parent=1 // pred_region
      %s34 = ssub.s32 2048, 2048
      %35 = vsyncadd [#allocation7], %s34
      %s36 = sshll.u32 [#allocation6], 4
      %s37 = int_to_ptr.vmem [resolvable:$true] %s36
      %42 = dma.hbm_to_vmem [thread:$0]  %s3, 2048, %s37, [#allocation7], 128, 128, 8
    $region17: #{mlp_forward_fused.1} parent=1 // pred_fallthru
      _
    // Predicated region
    $region18: #{mlp_forward_fused.1} parent=1 // pred_check
      _
    $region19: #{mlp_forward_fused.1} parent=1 // pred_check_branch
      %44 = sbr.rel (0) target = $region21
    $region20: #{mlp_forward_fused.1} parent=1 // pred_region
      _
    $region21: #{mlp_forward_fused.1} parent=1 // pred_fallthru
      _
    // Predicated region
    $region22: #{mlp_forward_fused.1} parent=1 // pred_check
      _
    $region23: #{mlp_forward_fused.1} parent=1 // pred_check_branch
      %46 = sbr.rel (0) target = $region25
    $region24: #{mlp_forward_fused.1} parent=1 // pred_region
      %s48 = ssub.s32 2048, 2048
      %49 = vsyncadd [#allocation7], %s48
      %s50 = sshll.u32 [#allocation8], 4
      %s51 = int_to_ptr.vmem [resolvable:$true] %s50
      %56 = dma.hbm_to_vmem [thread:$0]  %s5, 2048, %s51, [#allocation7], 128, 128, 8
    $region25: #{mlp_forward_fused.1} parent=1 // pred_fallthru
      _
    // Predicated region
    $region26: #{mlp_forward_fused.1} parent=1 // pred_check
      _
    $region27: #{mlp_forward_fused.1} parent=1 // pred_check_branch
      %58 = sbr.rel (0) target = $region29
    $region28: #{mlp_forward_fused.1} parent=1 // pred_region
      _
    $region29: #{mlp_forward_fused.1} parent=1 // pred_fallthru
      _
    // Predicated region
    $region30: #{mlp_forward_fused.1} parent=1 // pred_check
      _
    $region31: #{mlp_forward_fused.1} parent=1 // pred_check_branch
      %60 = sbr.rel (0) target = $region33
    $region32: #{mlp_forward_fused.1} parent=1 // pred_region
      %61 = dma.done [#allocation4], 2048
    $region33: #{mlp_forward_fused.1} parent=1 // pred_fallthru
      _
    // Predicated region
    $region34: #{mlp_forward_fused.1} parent=1 // pred_check
      _
    $region35: #{mlp_forward_fused.1} parent=1 // pred_check_branch
      %63 = sbr.rel (0) target = $region37
    $region36: #{mlp_forward_fused.1} parent=1 // pred_region
      %64 = dma.done [#allocation7], 2048
    $region37: #{mlp_forward_fused.1} parent=1 // pred_fallthru
      _
    // Predicated region
    $region38: #{mlp_forward_fused.1} parent=1 // pred_check
      _
    $region39: #{mlp_forward_fused.1} parent=1 // pred_check_branch
      %66 = sbr.rel (0) target = $region41
    $region40: #{mlp_forward_fused.1} parent=1 // pred_region
      %67 = dma.done [#allocation7], 2048
    $region41: #{mlp_forward_fused.1} parent=1 // pred_fallthru
      _
    %v68 = vld [vmem:[%s0] sm:$0xff]
    %v69 = vld [vmem:[#allocation3] sm:$0xff]
    %v70 = vld [vmem:[#allocation3 + $0x8] sm:$0xff]
    %v71 = vld [vmem:[#allocation3 + $0x10] sm:$0xff]
    %v72 = vld [vmem:[#allocation3 + $0x18] sm:$0xff]
    %v73 = vld [vmem:[#allocation3 + $0x20] sm:$0xff]
    %v74 = vld [vmem:[#allocation3 + $0x28] sm:$0xff]
    %v75 = vld [vmem:[#allocation3 + $0x30] sm:$0xff]
    %v76 = vld [vmem:[#allocation3 + $0x38] sm:$0xff]
    %v77 = vld [vmem:[#allocation3 + $0x40] sm:$0xff]
    %v78 = vld [vmem:[#allocation3 + $0x48] sm:$0xff]
    %v79 = vld [vmem:[#allocation3 + $0x50] sm:$0xff]
    %v80 = vld [vmem:[#allocation3 + $0x58] sm:$0xff]
    %v81 = vld [vmem:[#allocation3 + $0x60] sm:$0xff]
    %v82 = vld [vmem:[#allocation3 + $0x68] sm:$0xff]
    %v83 = vld [vmem:[#allocation3 + $0x70] sm:$0xff]
    %v84 = vld [vmem:[#allocation3 + $0x78] sm:$0xff]
    %v85 = vld [vmem:[%s2] sm:$0x1]
    %v87 = vlaneseq
    %v88 = vshrl.u32 %v87, 7
    %v89 = vsub.s32 0, %v88
    %v90 = vrot.slane %v85, %v89
    %92 = vmatprep.subr.mxu0 0.0
    %93 = vmatpush1.msra.mxu0 %v69
    %94 = vmatprep.subr.mxu0 0.0
    %95 = vmatpush1.msra.mxu0 %v70
    %96 = vmatprep.subr.mxu0 0.0
    %97 = vmatpush1.msra.mxu0 %v71
    %98 = vmatprep.subr.mxu0 0.0
    %99 = vmatpush1.msra.mxu0 %v72
    %100 = vmatprep.subr.mxu0 0.0
    %101 = vmatpush1.msra.mxu0 %v73
    %102 = vmatprep.subr.mxu0 0.0
    %103 = vmatpush1.msra.mxu0 %v74
    %104 = vmatprep.subr.mxu0 0.0
    %105 = vmatpush1.msra.mxu0 %v75
    %106 = vmatprep.subr.mxu0 0.0
    %107 = vmatpush1.msra.mxu0 %v76
    %108 = vmatprep.subr.mxu0 0.0
    %109 = vmatpush1.msra.mxu0 %v77
    %110 = vmatprep.subr.mxu0 0.0
    %111 = vmatpush1.msra.mxu0 %v78
    %112 = vmatprep.subr.mxu0 0.0
    %113 = vmatpush1.msra.mxu0 %v79
    %114 = vmatprep.subr.mxu0 0.0
    %115 = vmatpush1.msra.mxu0 %v80
    %116 = vmatprep.subr.mxu0 0.0
    %117 = vmatpush1.msra.mxu0 %v81
    %118 = vmatprep.subr.mxu0 0.0
    %119 = vmatpush1.msra.mxu0 %v82
    %120 = vmatprep.subr.mxu0 0.0
    %121 = vmatpush1.msra.mxu0 %v83
    %122 = vmatprep.subr.mxu0 0.0
    %123 = vmatpush1.msra.mxu0 %v84
    %124 = vmatprep.subr.mxu0 0.0
    %125 = vmatpush1.msra.mxu0 0.0
    %126 = vmatprep.subr.mxu0 0.0
    %127 = vmatpush1.msra.mxu0 0.0
    %128 = vmatprep.subr.mxu0 0.0
    %129 = vmatpush1.msra.mxu0 0.0
    %130 = vmatprep.subr.mxu0 0.0
    %131 = vmatpush1.msra.mxu0 0.0
    %132 = vmatprep.subr.mxu0 0.0
    %133 = vmatpush1.msra.mxu0 0.0
    %134 = vmatprep.subr.mxu0 0.0
    %135 = vmatpush1.msra.mxu0 0.0
    %136 = vmatprep.subr.mxu0 0.0
    %137 = vmatpush1.msra.mxu0 0.0
    %138 = vmatprep.subr.mxu0 0.0
    %139 = vmatpush1.msra.mxu0 0.0
    %140 = vmatprep.subr.mxu0 0.0
    %141 = vmatpush1.msra.mxu0 0.0
    %142 = vmatprep.subr.mxu0 0.0
    %143 = vmatpush1.msra.mxu0 0.0
    %144 = vmatprep.subr.mxu0 0.0
    %145 = vmatpush1.msra.mxu0 0.0
    %146 = vmatprep.subr.mxu0 0.0
    %147 = vmatpush1.msra.mxu0 0.0
    %148 = vmatprep.subr.mxu0 0.0
    %149 = vmatpush1.msra.mxu0 0.0
    %150 = vmatprep.subr.mxu0 0.0
    %151 = vmatpush1.msra.mxu0 0.0
    %152 = vmatprep.subr.mxu0 0.0
    %153 = vmatpush1.msra.mxu0 0.0
    %154 = vmatprep.subr.mxu0 0.0
    %155 = vmatpush1.msra.mxu0 0.0
    %156 = vmatprep.mubr.f32.mxu0 0.0
    %157 = vmatmul.mubr.f32.gmra.mrb[0].mxu0 %v68
    %v158 = vpop.f32.mrb[0].mxu0
    %v159 = vadd.f32 %v90, %v158
    %v160 = vpop.f32.mrb[0].mxu0
    %161 = vdwg.mxu0
    %v162 = vmax.f32 %v159, 0.0
    %163 = vst [vmem:[#allocation2] sm:$0xff] %v162
    %v164 = vld [vmem:[#allocation2] sm:$0xff]
    %v165 = vld [vmem:[#allocation6] sm:$0xff]
    %v166 = vld [vmem:[#allocation6 + $0x8] sm:$0xff]
    %v167 = vld [vmem:[#allocation6 + $0x10] sm:$0xff]
    %v168 = vld [vmem:[#allocation6 + $0x18] sm:$0xff]
    %v169 = vld [vmem:[#allocation6 + $0x20] sm:$0xff]
    %v170 = vld [vmem:[#allocation6 + $0x28] sm:$0xff]
    %v171 = vld [vmem:[#allocation6 + $0x30] sm:$0xff]
    %v172 = vld [vmem:[#allocation6 + $0x38] sm:$0xff]
    %v173 = vld [vmem:[#allocation6 + $0x40] sm:$0xff]
    %v174 = vld [vmem:[#allocation6 + $0x48] sm:$0xff]
    %v175 = vld [vmem:[#allocation6 + $0x50] sm:$0xff]
    %v176 = vld [vmem:[#allocation6 + $0x58] sm:$0xff]
    %v177 = vld [vmem:[#allocation6 + $0x60] sm:$0xff]
    %v178 = vld [vmem:[#allocation6 + $0x68] sm:$0xff]
    %v179 = vld [vmem:[#allocation6 + $0x70] sm:$0xff]
    %v180 = vld [vmem:[#allocation6 + $0x78] sm:$0xff]
    %v181 = vld [vmem:[%s4] sm:$0x1]
    %v183 = vlaneseq
    %v184 = vshrl.u32 %v183, 7
    %v185 = vsub.s32 0, %v184
    %v186 = vrot.slane %v181, %v185
    %188 = vmatprep.subr.mxu0 0.0
    %189 = vmatpush1.msra.mxu0 %v165
    %190 = vmatprep.subr.mxu0 0.0
    %191 = vmatpush1.msra.mxu0 %v166
    %192 = vmatprep.subr.mxu0 0.0
    %193 = vmatpush1.msra.mxu0 %v167
    %194 = vmatprep.subr.mxu0 0.0
    %195 = vmatpush1.msra.mxu0 %v168
    %196 = vmatprep.subr.mxu0 0.0
    %197 = vmatpush1.msra.mxu0 %v169
    %198 = vmatprep.subr.mxu0 0.0
    %199 = vmatpush1.msra.mxu0 %v170
    %200 = vmatprep.subr.mxu0 0.0
    %201 = vmatpush1.msra.mxu0 %v171
    %202 = vmatprep.subr.mxu0 0.0
    %203 = vmatpush1.msra.mxu0 %v172
    %204 = vmatprep.subr.mxu0 0.0
    %205 = vmatpush1.msra.mxu0 %v173
    %206 = vmatprep.subr.mxu0 0.0
    %207 = vmatpush1.msra.mxu0 %v174
    %208 = vmatprep.subr.mxu0 0.0
    %209 = vmatpush1.msra.mxu0 %v175
    %210 = vmatprep.subr.mxu0 0.0
    %211 = vmatpush1.msra.mxu0 %v176
    %212 = vmatprep.subr.mxu0 0.0
    %213 = vmatpush1.msra.mxu0 %v177
    %214 = vmatprep.subr.mxu0 0.0
    %215 = vmatpush1.msra.mxu0 %v178
    %216 = vmatprep.subr.mxu0 0.0
    %217 = vmatpush1.msra.mxu0 %v179
    %218 = vmatprep.subr.mxu0 0.0
    %219 = vmatpush1.msra.mxu0 %v180
    %220 = vmatprep.subr.mxu0 0.0
    %221 = vmatpush1.msra.mxu0 0.0
    %222 = vmatprep.subr.mxu0 0.0
    %223 = vmatpush1.msra.mxu0 0.0
    %224 = vmatprep.subr.mxu0 0.0
    %225 = vmatpush1.msra.mxu0 0.0
    %226 = vmatprep.subr.mxu0 0.0
    %227 = vmatpush1.msra.mxu0 0.0
    %228 = vmatprep.subr.mxu0 0.0
    %229 = vmatpush1.msra.mxu0 0.0
    %230 = vmatprep.subr.mxu0 0.0
    %231 = vmatpush1.msra.mxu0 0.0
    %232 = vmatprep.subr.mxu0 0.0
    %233 = vmatpush1.msra.mxu0 0.0
    %234 = vmatprep.subr.mxu0 0.0
    %235 = vmatpush1.msra.mxu0 0.0
    %236 = vmatprep.subr.mxu0 0.0
    %237 = vmatpush1.msra.mxu0 0.0
    %238 = vmatprep.subr.mxu0 0.0
    %239 = vmatpush1.msra.mxu0 0.0
    %240 = vmatprep.subr.mxu0 0.0
    %241 = vmatpush1.msra.mxu0 0.0
    %242 = vmatprep.subr.mxu0 0.0
    %243 = vmatpush1.msra.mxu0 0.0
    %244 = vmatprep.subr.mxu0 0.0
    %245 = vmatpush1.msra.mxu0 0.0
    %246 = vmatprep.subr.mxu0 0.0
    %247 = vmatpush1.msra.mxu0 0.0
    %248 = vmatprep.subr.mxu0 0.0
    %249 = vmatpush1.msra.mxu0 0.0
    %250 = vmatprep.subr.mxu0 0.0
    %251 = vmatpush1.msra.mxu0 0.0
    %252 = vmatprep.mubr.f32.mxu0 0.0
    %253 = vmatmul.mubr.f32.gmra.mrb[0].mxu0 %v164
    %v254 = vpop.f32.mrb[0].mxu0
    %v255 = vadd.f32 %v186, %v254
    %v256 = vpop.f32.mrb[0].mxu0
    %257 = vdwg.mxu0
    %v258 = vmax.f32 %v255, 0.0
    %259 = vst [vmem:[#allocation2] sm:$0xff] %v258
    %v260 = vld [vmem:[#allocation2] sm:$0xff]
    %v261 = vld [vmem:[#allocation8] sm:$0xff]
    %v262 = vld [vmem:[#allocation8 + $0x8] sm:$0xff]
    %v263 = vld [vmem:[#allocation8 + $0x10] sm:$0xff]
    %v264 = vld [vmem:[#allocation8 + $0x18] sm:$0xff]
    %v265 = vld [vmem:[#allocation8 + $0x20] sm:$0xff]
    %v266 = vld [vmem:[#allocation8 + $0x28] sm:$0xff]
    %v267 = vld [vmem:[#allocation8 + $0x30] sm:$0xff]
    %v268 = vld [vmem:[#allocation8 + $0x38] sm:$0xff]
    %v269 = vld [vmem:[#allocation8 + $0x40] sm:$0xff]
    %v270 = vld [vmem:[#allocation8 + $0x48] sm:$0xff]
    %v271 = vld [vmem:[#allocation8 + $0x50] sm:$0xff]
    %v272 = vld [vmem:[#allocation8 + $0x58] sm:$0xff]
    %v273 = vld [vmem:[#allocation8 + $0x60] sm:$0xff]
    %v274 = vld [vmem:[#allocation8 + $0x68] sm:$0xff]
    %v275 = vld [vmem:[#allocation8 + $0x70] sm:$0xff]
    %v276 = vld [vmem:[#allocation8 + $0x78] sm:$0xff]
    %v277 = vld [vmem:[%s6] sm:$0x1]
    %v279 = vlaneseq
    %v280 = vshrl.u32 %v279, 7
    %v281 = vsub.s32 0, %v280
    %v282 = vrot.slane %v277, %v281
    %284 = vmatprep.subr.mxu0 0.0
    %285 = vmatpush1.msra.mxu0 %v261
    %286 = vmatprep.subr.mxu0 0.0
    %287 = vmatpush1.msra.mxu0 %v262
    %288 = vmatprep.subr.mxu0 0.0
    %289 = vmatpush1.msra.mxu0 %v263
    %290 = vmatprep.subr.mxu0 0.0
    %291 = vmatpush1.msra.mxu0 %v264
    %292 = vmatprep.subr.mxu0 0.0
    %293 = vmatpush1.msra.mxu0 %v265
    %294 = vmatprep.subr.mxu0 0.0
    %295 = vmatpush1.msra.mxu0 %v266
    %296 = vmatprep.subr.mxu0 0.0
    %297 = vmatpush1.msra.mxu0 %v267
    %298 = vmatprep.subr.mxu0 0.0
    %299 = vmatpush1.msra.mxu0 %v268
    %300 = vmatprep.subr.mxu0 0.0
    %301 = vmatpush1.msra.mxu0 %v269
    %302 = vmatprep.subr.mxu0 0.0
    %303 = vmatpush1.msra.mxu0 %v270
    %304 = vmatprep.subr.mxu0 0.0
    %305 = vmatpush1.msra.mxu0 %v271
    %306 = vmatprep.subr.mxu0 0.0
    %307 = vmatpush1.msra.mxu0 %v272
    %308 = vmatprep.subr.mxu0 0.0
    %309 = vmatpush1.msra.mxu0 %v273
    %310 = vmatprep.subr.mxu0 0.0
    %311 = vmatpush1.msra.mxu0 %v274
    %312 = vmatprep.subr.mxu0 0.0
    %313 = vmatpush1.msra.mxu0 %v275
    %314 = vmatprep.subr.mxu0 0.0
    %315 = vmatpush1.msra.mxu0 %v276
    %316 = vmatprep.subr.mxu0 0.0
    %317 = vmatpush1.msra.mxu0 0.0
    %318 = vmatprep.subr.mxu0 0.0
    %319 = vmatpush1.msra.mxu0 0.0
    %320 = vmatprep.subr.mxu0 0.0
    %321 = vmatpush1.msra.mxu0 0.0
    %322 = vmatprep.subr.mxu0 0.0
    %323 = vmatpush1.msra.mxu0 0.0
    %324 = vmatprep.subr.mxu0 0.0
    %325 = vmatpush1.msra.mxu0 0.0
    %326 = vmatprep.subr.mxu0 0.0
    %327 = vmatpush1.msra.mxu0 0.0
    %328 = vmatprep.subr.mxu0 0.0
    %329 = vmatpush1.msra.mxu0 0.0
    %330 = vmatprep.subr.mxu0 0.0
    %331 = vmatpush1.msra.mxu0 0.0
    %332 = vmatprep.subr.mxu0 0.0
    %333 = vmatpush1.msra.mxu0 0.0
    %334 = vmatprep.subr.mxu0 0.0
    %335 = vmatpush1.msra.mxu0 0.0
    %336 = vmatprep.subr.mxu0 0.0
    %337 = vmatpush1.msra.mxu0 0.0
    %338 = vmatprep.subr.mxu0 0.0
    %339 = vmatpush1.msra.mxu0 0.0
    %340 = vmatprep.subr.mxu0 0.0
    %341 = vmatpush1.msra.mxu0 0.0
    %342 = vmatprep.subr.mxu0 0.0
    %343 = vmatpush1.msra.mxu0 0.0
    %344 = vmatprep.subr.mxu0 0.0
    %345 = vmatpush1.msra.mxu0 0.0
    %346 = vmatprep.subr.mxu0 0.0
    %347 = vmatpush1.msra.mxu0 0.0
    %348 = vmatprep.mubr.f32.mxu0 0.0
    %349 = vmatmul.mubr.f32.gmra.mrb[0].mxu0 %v260
    %v350 = vpop.f32.mrb[0].mxu0
    %v351 = vadd.f32 %v282, %v350
    %v352 = vpop.f32.mrb[0].mxu0
    %353 = vdwg.mxu0
    %354 = vst [vmem:[#allocation9] sm:$0xff] %v351
    // Predicated region
    $region42: #{mlp_forward_fused.1} parent=1 // pred_check
      _
    $region43: #{mlp_forward_fused.1} parent=1 // pred_check_branch
      %356 = sbr.rel (0) target = $region45
    $region44: #{mlp_forward_fused.1} parent=1 // pred_region
      %s358 = ssub.s32 128, 128
      %359 = vsyncadd [#allocation5], %s358
      %s361 = sshll.u32 [#allocation9], 4
      %s362 = int_to_ptr.vmem [resolvable:$true] %s361
      %364 = dma.vmem_to_hbm [thread:$0]  %s362, 128, %s7, [#allocation5]
    $region45: #{mlp_forward_fused.1} parent=1 // pred_fallthru
      _
    // Predicated region
    $region46: #{mlp_forward_fused.1} parent=1 // pred_check
      _
    $region47: #{mlp_forward_fused.1} parent=1 // pred_check_branch
      %366 = sbr.rel (0) target = $region49
    $region48: #{mlp_forward_fused.1} parent=1 // pred_region
      %367 = dma.done [#allocation5], 128
    $region49: #{mlp_forward_fused.1} parent=1 // pred_fallthru
      _
    %368 = vsyncpa [#allocation4], 1
    %369 = vsyncpa [#allocation7], 1
    %370 = vsyncpa [#allocation5], 1

</llo_original>
